<compile_context>
chip_gen: v5e
topology: v5e:2x2
jax: 0.10.0
libtpu: 0.0.40
codegen_flags: <defaults>
</compile_context>

<pallas_src>
import jax
import jax.numpy as jnp
import numpy as np
from jax.experimental import pallas as pl
from jax.experimental.pallas import tpu as pltpu


# ----------------------------------------------------------------------------
# small helpers shared by kernels and the pure-JAX reference
# ----------------------------------------------------------------------------
def _elu(x):
    # ELU(alpha=1): exp path only evaluated on the non-positive branch values.
    return jnp.where(x > 0, x, jnp.exp(jnp.minimum(x, 0.0)) - 1.0)


def _sigmoid(x):
    # tanh-based sigmoid: one EUP tanh instead of exp + full-precision divide.
    return 0.5 * (jnp.tanh(0.5 * x) + 1.0)


def _vmem_capacity_bytes():
    """Best-effort generation-aware VMEM capacity (v5e/v6e 128 MiB, v7x 64 MiB)."""
    try:
        return int(pltpu.get_tpu_info().vmem_capacity_bytes)
    except Exception:
        return 64 * 1024 * 1024      # conservative fallback: v7x physical VMEM


def _vmem_limit_bytes(cap):
    # leave headroom below physical; 100 MiB cap keeps the request legal everywhere
    return int(min(cap * 3 // 4, 100 * 1024 * 1024))


def _pick_batch_tile(B, per_batch_bytes, budget_bytes):
    """Image-head batches per grid step: as large as the VMEM budget allows,
    but (when possible) leaving >=2 grid steps so v7x's two TensorCores can
    split the 'parallel' batch axis."""
    bt = int(max(1, min(B, budget_bytes // max(per_batch_bytes, 1))))
    while B % bt:
        bt -= 1
    if bt == B and B > 1:
        for cand in range(B // 2, 0, -1):
            if B % cand == 0:
                bt = cand
                break
    return bt


def _pick_seq_batch_tile(B, per_batch_bytes, budget_bytes):
    """Batch tile for the fused LSTM+head kernel.  Only splits the batch when
    it stays lane-aligned (multiples of 128) so the (1, bt)/(T, bt) blocks stay
    legal; small batches run as a single grid step (whole sequence in VMEM)."""
    # TODO(synk): at production shapes where 128 rows exceed the VMEM budget,
    # restructure the lengths input (SMEM prefetch) before shrinking below 128.
    if B >= 256 and B % 256 == 0:
        bt = 128
        while (B % (bt * 2) == 0 and (bt * 2) * 2 <= B
               and per_batch_bytes * bt * 2 <= budget_bytes):
            bt *= 2
        return bt
    return B


# ----------------------------------------------------------------------------
# Kernel 1: image head — two BN-folded 1x1 convs + ELU, NCHW-native layout
# ----------------------------------------------------------------------------
def image_head_kernel(x_ref, w1_ref, b1_ref, w2_ref, b2_ref, k_ref):
    # x_ref: (Bt, Cin, HW) f32, channels on sublanes, spatial on lanes.
    # w1/w2 are BN-folded and pre-cast to bf16 in the wrapper.
    d, HW = k_ref.shape[1], k_ref.shape[2]
    w1 = w1_ref[...]                                    # (d, Cin) bf16
    w2 = w2_ref[...]                                    # (d, d)   bf16
    # hoist the bias broadcasts out of the per-batch loop (no CSE of
    # broadcast_in_dim inside the unrolled loop otherwise)
    b1 = jnp.broadcast_to(b1_ref[...], (d, HW))         # (d, HW) f32
    b2 = jnp.broadcast_to(b2_ref[...], (d, HW))
    bt = x_ref.shape[0]
    for i in range(bt):                                 # static, small batch tile
        h = jnp.dot(w1, x_ref[i].astype(jnp.bfloat16),
                    preferred_element_type=jnp.float32) + b1
        h = _elu(h)
        h = jnp.dot(w2, h.astype(jnp.bfloat16),
                    preferred_element_type=jnp.float32) + b2
        k_ref[i] = _elu(h).astype(k_ref.dtype)


# ----------------------------------------------------------------------------
# Kernel 2: fused bidirectional single-layer LSTM + question head
# ----------------------------------------------------------------------------
def bilstm_head_kernel(emb_ref, len_ref, mask_ref,
                       wif_ref, whf_ref, bf_ref, wib_ref, whb_ref, bb_ref,
                       wq_ref, bq_ref, wcw1_ref, wcw2_ref, bcw_ref,
                       qcat_ref, qflat_ref, cwout_ref,
                       gf_s, gb_s, hf_s, hb_s):
    # emb_ref : (T, bt, E) f32 time-major embeddings
    # len_ref : (1, bt) int32, mask_ref: (T, bt) f32
    # weights pre-transposed + bf16: w_ih.T (E,4d), w_hh.T (d,4d); biases f32.
    # Gate order i, f, g, o (PyTorch).
    T, bt, E = emb_ref.shape
    d = whf_ref.shape[0]

    # ---- input projection hoisted out of the recurrence: two big matmuls ----
    x2 = emb_ref[...].reshape(T * bt, E).astype(jnp.bfloat16)
    gf_s[...] = (jnp.dot(x2, wif_ref[...], preferred_element_type=jnp.float32)
                 + bf_ref[...]).reshape(T, bt, 4 * d)
    gb_s[...] = (jnp.dot(x2, wib_ref[...], preferred_element_type=jnp.float32)
                 + bb_ref[...]).reshape(T, bt, 4 * d)

    whf = whf_ref[...]                                  # (d, 4d) bf16
    whb = whb_ref[...]

    def cell(g_in, h, c, whh):
        g = g_in + jnp.dot(h.astype(jnp.bfloat16), whh,
                           preferred_element_type=jnp.float32)
        i = _sigmoid(g[:, 0 * d:1 * d])
        f = _sigmoid(g[:, 1 * d:2 * d])
        gg = jnp.tanh(g[:, 2 * d:3 * d])
        o = _sigmoid(g[:, 3 * d:4 * d])
        c_new = f * c + i * gg
        h_new = o * jnp.tanh(c_new)
        return h_new, c_new

    def step(t, carry):
        h_f, c_f, h_b, c_b = carry
        h_f, c_f = cell(gf_s[t], h_f, c_f, whf)             # forward,  time t
        h_b, c_b = cell(gb_s[T - 1 - t], h_b, c_b, whb)     # backward, time T-1-t
        hf_s[t] = h_f
        hb_s[T - 1 - t] = h_b
        return h_f, c_f, h_b, c_b

    z = jnp.zeros((bt, d), jnp.float32)
    # small unroll keeps LLO scheduling visibility without exploding live ranges
    jax.lax.fori_loop(0, T, step, (z, z, z, z), unroll=2)

    # ---- question head, fused: LSTM outputs are already resident in VMEM ----
    hf = hf_s[...]                                       # (T, bt, d)
    hb = hb_s[...]
    cw_1 = hb[0]                                         # backward hidden @ t=0
    # cw_s = forward hidden at t = lengths[b] — one-hot reduce over T
    t_iota = jax.lax.broadcasted_iota(jnp.int32, (T, bt), 0)
    sel = (t_iota == len_ref[...]).astype(jnp.float32)   # (T, bt)
    cw_s = jnp.sum(sel[:, :, None] * hf, axis=0)         # (bt, d)
    qcat = jnp.concatenate([cw_1, cw_s], axis=-1)        # (bt, 2d)
    qcat_ref[...] = qcat.astype(qcat_ref.dtype)

    # all p linear_q projections collapsed into ONE lane-dense matmul
    qflat_ref[...] = (jnp.dot(qcat.astype(jnp.bfloat16), wq_ref[...],
                              preferred_element_type=jnp.float32)
                      + bq_ref[...]).astype(qflat_ref.dtype)

    # linear_cw over the whole sequence; the 2d concat is split in two matmuls
    hf2 = hf.reshape(T * bt, d).astype(jnp.bfloat16)
    hb2 = hb.reshape(T * bt, d).astype(jnp.bfloat16)
    cwp = (jnp.dot(hf2, wcw1_ref[...], preferred_element_type=jnp.float32)
           + jnp.dot(hb2, wcw2_ref[...], preferred_element_type=jnp.float32)
           + bcw_ref[...]).reshape(T, bt, d)
    cwout_ref[...] = jnp.where(mask_ref[...][:, :, None] > 0.0, cwp,
                               0.0).astype(cwout_ref.dtype)


# ----------------------------------------------------------------------------
# Wrapper: InputUnit.forward
# ----------------------------------------------------------------------------
def input_unit_forward(x_feat, q_ids, lengths, mask, params):
    """Pallas implementation of InputUnit.forward (post-resnet part).

    x_feat : (B, Cin, H, W) feature map from the (untranslated) resnet trunk
    q_ids  : (B, T) int32 token ids
    lengths: (B,)   int32 gather index per question
    mask   : (B, T) float validity mask (1 = keep, 0 = zero out)
    returns (k, q_, q, cw): (B,d,H,W), (B,2d), (p,B,d), (B,T,d)
    """
    B, Cin, H, W = x_feat.shape
    HW = H * W
    d = params["conv1_w"].shape[0]
    eps = 1e-5

    cap = _vmem_capacity_bytes()
    vmem_limit = _vmem_limit_bytes(cap)

    # -------- image head: fold eval-mode BatchNorm, cast weights to bf16 -----
    s1 = params["bn1_gamma"] / jnp.sqrt(params["bn1_var"] + eps)
    w1f = (params["conv1_w"] * s1[:, None]).astype(jnp.bfloat16)        # (d,Cin)
    b1f = ((params["conv1_b"] - params["bn1_mean"]) * s1
           + params["bn1_beta"]).reshape(d, 1).astype(jnp.float32)
    s2 = params["bn2_gamma"] / jnp.sqrt(params["bn2_var"] + eps)
    w2f = (params["conv2_w"] * s2[:, None]).astype(jnp.bfloat16)        # (d,d)
    b2f = ((params["conv2_b"] - params["bn2_mean"]) * s2
           + params["bn2_beta"]).reshape(d, 1).astype(jnp.float32)

    x_flat = x_feat.reshape(B, Cin, HW)   # NCHW-native; free reshape, no transpose
    # input + output f32 tiles, both double-buffered by BlockSpec pipelining
    per_batch_img = (Cin + d) * HW * 4 * 2
    budget_img = min(24 * 1024 * 1024, cap // 4)
    bt_img = _pick_batch_tile(B, per_batch_img, budget_img)

    k_flat = pl.pallas_call(
        image_head_kernel,
        out_shape=jax.ShapeDtypeStruct((B, d, HW), jnp.float32),
        grid_spec=pltpu.PrefetchScalarGridSpec(
            num_scalar_prefetch=0,
            grid=(B // bt_img,),
            in_specs=[
                pl.BlockSpec((bt_img, Cin, HW), lambda i: (i, 0, 0)),
                pl.BlockSpec((d, Cin), lambda i: (0, 0)),
                pl.BlockSpec((d, 1), lambda i: (0, 0)),
                pl.BlockSpec((d, d), lambda i: (0, 0)),
                pl.BlockSpec((d, 1), lambda i: (0, 0)),
            ],
            out_specs=pl.BlockSpec((bt_img, d, HW), lambda i: (i, 0, 0)),
        ),
        compiler_params=pltpu.CompilerParams(
            dimension_semantics=("parallel",),
            vmem_limit_bytes=vmem_limit,
        ),
        cost_estimate=pl.CostEstimate(
            flops=2 * B * HW * (Cin * d + d * d),
            transcendentals=2 * B * HW * d,
            bytes_accessed=4 * (B * (Cin + d) * HW + d * Cin + d * d + 2 * d),
        ),
    )(x_flat, w1f, b1f, w2f, b2f)
    k = k_flat.reshape(B, d, H, W)        # free reshape back to NCHW

    # -------- fused question encoder: embedding gather + bi-LSTM + head ------
    T = q_ids.shape[1]
    E = params["embed"].shape[1]
    P = params["linear_q_w"].shape[0]

    # gather directly time-major: no (B,T,E)->(T,B,E) wrapper transpose
    emb_tm = params["embed"][q_ids.T].astype(jnp.float32)               # (T,B,E)

    wif = params["w_ih_f"].T.astype(jnp.bfloat16)                        # (E,4d)
    whf = params["w_hh_f"].T.astype(jnp.bfloat16)                        # (d,4d)
    bf = (params["b_ih_f"] + params["b_hh_f"]).reshape(1, 4 * d).astype(jnp.float32)
    wib = params["w_ih_b"].T.astype(jnp.bfloat16)
    whb = params["w_hh_b"].T.astype(jnp.bfloat16)
    bb = (params["b_ih_b"] + params["b_hh_b"]).reshape(1, 4 * d).astype(jnp.float32)

    # all p linear_q projections stacked into one (2d, p*d) weight (lane-dense)
    wq = jnp.transpose(params["linear_q_w"], (2, 0, 1)).reshape(
        2 * d, P * d).astype(jnp.bfloat16)
    bq = params["linear_q_b"].reshape(1, P * d).astype(jnp.float32)
    wcw_t = params["linear_cw_w"].T                                      # (2d, d)
    wcw1 = wcw_t[:d].astype(jnp.bfloat16)
    wcw2 = wcw_t[d:].astype(jnp.bfloat16)
    bcw = params["linear_cw_b"].reshape(1, d).astype(jnp.float32)

    len_row = lengths.reshape(1, B).astype(jnp.int32)
    mask_tm = mask.astype(jnp.float32).T                                 # (T, B)

    # whole-sequence VMEM footprint per batch row (emb + gate/hidden scratch + out)
    per_batch_seq = T * 4 * (2 * E + 12 * d)
    bt = _pick_seq_batch_tile(B, per_batch_seq, min(20 * 1024 * 1024, cap // 3))

    def full(shape):
        n = len(shape)
        return pl.BlockSpec(shape, lambda i, _n=n: (0,) * _n)

    q_cat, q_flat, cw_tm = pl.pallas_call(
        bilstm_head_kernel,
        out_shape=(jax.ShapeDtypeStruct((B, 2 * d), jnp.float32),
                   jax.ShapeDtypeStruct((B, P * d), jnp.float32),
                   jax.ShapeDtypeStruct((T, B, d), jnp.float32)),
        grid_spec=pltpu.PrefetchScalarGridSpec(
            num_scalar_prefetch=0,
            grid=(B // bt,),
            in_specs=[
                pl.BlockSpec((T, bt, E), lambda i: (0, i, 0)),
                pl.BlockSpec((1, bt), lambda i: (0, i)),
                pl.BlockSpec((T, bt), lambda i: (0, i)),
                full((E, 4 * d)), full((d, 4 * d)), full((1, 4 * d)),
                full((E, 4 * d)), full((d, 4 * d)), full((1, 4 * d)),
                full((2 * d, P * d)), full((1, P * d)),
                full((d, d)), full((d, d)), full((1, d)),
            ],
            out_specs=[
                pl.BlockSpec((bt, 2 * d), lambda i: (i, 0)),
                pl.BlockSpec((bt, P * d), lambda i: (i, 0)),
                pl.BlockSpec((T, bt, d), lambda i: (0, i, 0)),
            ],
            scratch_shapes=[
                pltpu.VMEM((T, bt, 4 * d), jnp.float32),   # forward gate pre-acts
                pltpu.VMEM((T, bt, 4 * d), jnp.float32),   # backward gate pre-acts
                pltpu.VMEM((T, bt, d), jnp.float32),       # forward hidden states
                pltpu.VMEM((T, bt, d), jnp.float32),       # backward hidden states
            ],
        ),
        compiler_params=pltpu.CompilerParams(
            dimension_semantics=("parallel",),
            vmem_limit_bytes=vmem_limit,
        ),
    )(emb_tm, len_row, mask_tm, wif, whf, bf, wib, whb, bb,
      wq, bq, wcw1, wcw2, bcw)

    # tiny wrapper reshapes: (B, p*d) -> (p, B, d); time-major -> batch-major cw
    q_stack = q_flat.reshape(B, P, d).transpose(1, 0, 2)
    cw_out = jnp.transpose(cw_tm, (1, 0, 2))                            # (B, T, d)

    return k, q_cat, q_stack, cw_out


# ----------------------------------------------------------------------------
# Pure-JAX reference reproducing the PyTorch forward (eval-mode BatchNorm, f32)
# ----------------------------------------------------------------------------
def _reference(x_feat, q_ids, lengths, mask, params):
    eps = 1e-5
    B = x_feat.shape[0]
    d = params["conv1_w"].shape[0]
    P = params["linear_q_w"].shape[0]

    def sig(v):
        return 1.0 / (1.0 + jnp.exp(-v))

    def bn(y, g, b, m, v):
        return ((y - m[None, :, None, None])
                / jnp.sqrt(v[None, :, None, None] + eps)
                * g[None, :, None, None] + b[None, :, None, None])

    y = (jnp.einsum("oc,bchw->bohw", params["conv1_w"], x_feat)
         + params["conv1_b"][None, :, None, None])
    y = _elu(bn(y, params["bn1_gamma"], params["bn1_beta"],
                params["bn1_mean"], params["bn1_var"]))
    y = (jnp.einsum("oc,bchw->bohw", params["conv2_w"], y)
         + params["conv2_b"][None, :, None, None])
    k = _elu(bn(y, params["bn2_gamma"], params["bn2_beta"],
                params["bn2_mean"], params["bn2_var"]))

    emb = params["embed"][q_ids]                                         # (B, T, E)
    x_tm = jnp.transpose(emb, (1, 0, 2))                                 # (T, B, E)

    def run_dir(x_seq, wih, whh, b):
        dd = whh.shape[1]

        def step(carry, xt):
            h, c = carry
            g = xt @ wih.T + h @ whh.T + b
            i = sig(g[:, :dd])
            f = sig(g[:, dd:2 * dd])
            gg = jnp.tanh(g[:, 2 * dd:3 * dd])
            o = sig(g[:, 3 * dd:])
            c = f * c + i * gg
            h = o * jnp.tanh(c)
            return (h, c), h

        Bn = x_seq.shape[1]
        init = (jnp.zeros((Bn, dd), jnp.float32),
                jnp.zeros((Bn, dd), jnp.float32))
        _, hs = jax.lax.scan(step, init, x_seq)
        return hs                                                        # (T, B, d)

    hf = run_dir(x_tm, params["w_ih_f"], params["w_hh_f"],
                 params["b_ih_f"] + params["b_hh_f"])
    hb = run_dir(x_tm[::-1], params["w_ih_b"], params["w_hh_b"],
                 params["b_ih_b"] + params["b_hh_b"])[::-1]
    cw = jnp.concatenate([hf, hb], axis=-1).transpose(1, 0, 2)           # (B, T, 2d)

    cw_1 = cw[:, 0, d:]
    cw_s = cw[jnp.arange(B), lengths, :d]
    q_ = jnp.concatenate([cw_1, cw_s], axis=-1)
    q = jnp.stack([q_ @ params["linear_q_w"][i].T + params["linear_q_b"][i]
                   for i in range(P)])
    cw_proj = cw @ params["linear_cw_w"].T + params["linear_cw_b"]
    cw_out = jnp.where(mask[:, :, None] > 0, cw_proj, 0.0)
    return k, q_, q, cw_out


if __name__ == "__main__":
    # Small shapes: Cin=64 stands in for resnet's 1024 channels.
    B, Cin, H, W = 2, 64, 8, 8
    d, E, T, V, P = 32, 16, 8, 50, 3

    key = jax.random.PRNGKey(0)
    ks = iter(jax.random.split(key, 40))

    def nrm(shape, scale=0.1):
        return jax.random.normal(next(ks), shape, jnp.float32) * scale

    params = {
        # image head: Conv2d(Cin,d,1)+BN+ELU, Conv2d(d,d,1)+BN+ELU
        "conv1_w": nrm((d, Cin), 0.05), "conv1_b": nrm((d,), 0.05),
        "bn1_gamma": 1.0 + nrm((d,), 0.05), "bn1_beta": nrm((d,), 0.05),
        "bn1_mean": nrm((d,), 0.05),
        "bn1_var": 1.0 + jax.random.uniform(next(ks), (d,), jnp.float32, 0.0, 0.5),
        "conv2_w": nrm((d, d), 0.05), "conv2_b": nrm((d,), 0.05),
        "bn2_gamma": 1.0 + nrm((d,), 0.05), "bn2_beta": nrm((d,), 0.05),
        "bn2_mean": nrm((d,), 0.05),
        "bn2_var": 1.0 + jax.random.uniform(next(ks), (d,), jnp.float32, 0.0, 0.5),
        # embedding + bidirectional 1-layer LSTM (PyTorch layout, gates i,f,g,o)
        "embed": nrm((V, E), 0.5),
        "w_ih_f": nrm((4 * d, E), 0.1), "w_hh_f": nrm((4 * d, d), 0.1),
        "b_ih_f": nrm((4 * d,), 0.1), "b_hh_f": nrm((4 * d,), 0.1),
        "w_ih_b": nrm((4 * d, E), 0.1), "w_hh_b": nrm((4 * d, d), 0.1),
        "b_ih_b": nrm((4 * d,), 0.1), "b_hh_b": nrm((4 * d,), 0.1),
        # p question projections + linear_cw (nn.Linear layout)
        "linear_q_w": nrm((P, d, 2 * d), 0.1), "linear_q_b": nrm((P, d), 0.1),
        "linear_cw_w": nrm((d, 2 * d), 0.1), "linear_cw_b": nrm((d,), 0.1),
    }

    x_feat = jax.random.normal(next(ks), (B, Cin, H, W), jnp.float32)
    q_ids = jax.random.randint(next(ks), (B, T), 0, V)
    lengths = jax.random.randint(next(ks), (B,), 0, T)
    mask = (jnp.arange(T)[None, :] <= lengths[:, None]).astype(jnp.float32)

    k, q_cat, q_stack, cw = input_unit_forward(x_feat, q_ids, lengths, mask, params)
    jax.block_until_ready((k, q_cat, q_stack, cw))

    k_r, q_cat_r, q_stack_r, cw_r = _reference(x_feat, q_ids, lengths, mask, params)
    # bf16 MXU operands (f32 accumulate) -> looser tolerances than a pure-f32 run
    np.testing.assert_allclose(np.asarray(k), np.asarray(k_r), rtol=2e-2, atol=2e-2)
    np.testing.assert_allclose(np.asarray(q_cat), np.asarray(q_cat_r), rtol=2e-2, atol=2e-2)
    np.testing.assert_allclose(np.asarray(q_stack), np.asarray(q_stack_r), rtol=2e-2, atol=2e-2)
    np.testing.assert_allclose(np.asarray(cw), np.asarray(cw_r), rtol=2e-2, atol=2e-2)

    print("KERNEL_OK")
</pallas_src>

<mosaic_0001>
module attributes {stable_mosaic.version = 11 : i64} {
  func.func @image_head_kernel(%arg0: i32, %arg1: memref<1x64x64xf32, #tpu.memory_space<vmem>>, %arg2: memref<32x64xbf16, #tpu.memory_space<vmem>>, %arg3: memref<32x1xf32, #tpu.memory_space<vmem>>, %arg4: memref<32x32xbf16, #tpu.memory_space<vmem>>, %arg5: memref<32x1xf32, #tpu.memory_space<vmem>>, %arg6: memref<1x32x64xf32, #tpu.memory_space<vmem>>) attributes {dimension_semantics = [#tpu.dimension_semantics<parallel>], iteration_bounds = array<i64: 2>, scalar_prefetch = 0 : i64, scratch_operands = 0 : i64, tpu.core_type = #tpu.core_type<tc>, window_params = [{transform_indices = @transform_0, window_bounds = array<i64: 1, 64, 64>}, {pipeline_mode = #tpu.pipeline_mode<synchronous>, transform_indices = @transform_1, window_bounds = array<i64: 32, 64>}, {pipeline_mode = #tpu.pipeline_mode<synchronous>, transform_indices = @transform_2, window_bounds = array<i64: 32, 1>}, {pipeline_mode = #tpu.pipeline_mode<synchronous>, transform_indices = @transform_3, window_bounds = array<i64: 32, 32>}, {pipeline_mode = #tpu.pipeline_mode<synchronous>, transform_indices = @transform_4, window_bounds = array<i64: 32, 1>}, {transform_indices = @transform_5, window_bounds = array<i64: 1, 32, 64>}]} {
    %c0 = arith.constant 0 : index
    %c0_0 = arith.constant 0 : index
    %0 = vector.load %arg2[%c0, %c0_0] : memref<32x64xbf16, #tpu.memory_space<vmem>>, vector<32x64xbf16>
    %c0_1 = arith.constant 0 : index
    %c0_2 = arith.constant 0 : index
    %1 = vector.load %arg4[%c0_1, %c0_2] : memref<32x32xbf16, #tpu.memory_space<vmem>>, vector<32x32xbf16>
    %c0_3 = arith.constant 0 : index
    %c0_4 = arith.constant 0 : index
    %2 = vector.load %arg3[%c0_3, %c0_4] : memref<32x1xf32, #tpu.memory_space<vmem>>, vector<32x1xf32>
    %3 = vector.shape_cast %2 : vector<32x1xf32> to vector<32x1xf32>
    %4 = vector.broadcast %3 : vector<32x1xf32> to vector<32x64xf32>
    %c0_5 = arith.constant 0 : index
    %c0_6 = arith.constant 0 : index
    %5 = vector.load %arg5[%c0_5, %c0_6] : memref<32x1xf32, #tpu.memory_space<vmem>>, vector<32x1xf32>
    %6 = vector.shape_cast %5 : vector<32x1xf32> to vector<32x1xf32>
    %7 = vector.broadcast %6 : vector<32x1xf32> to vector<32x64xf32>
    %c0_7 = arith.constant 0 : index
    %c0_8 = arith.constant 0 : index
    %c0_9 = arith.constant 0 : index
    %8 = vector.load %arg1[%c0_7, %c0_8, %c0_9] : memref<1x64x64xf32, #tpu.memory_space<vmem>>, vector<1x64x64xf32>
    %9 = vector.shape_cast %8 : vector<1x64x64xf32> to vector<64x64xf32>
    %10 = arith.truncf %9 : vector<64x64xf32> to vector<64x64xbf16>
    %cst = arith.constant dense<0.000000e+00> : vector<32x64xf32>
    %11 = tpu.matmul %0, %10, %cst {dimension_numbers = #tpu.dot_dimension_numbers<[1], [0], [0], [1], [0, 0, 1, 1], [], []>} : vector<32x64xbf16>, vector<64x64xbf16>, vector<32x64xf32> -> vector<32x64xf32>
    %12 = arith.addf %11, %4 : vector<32x64xf32>
    %cst_10 = arith.constant 0.000000e+00 : f32
    %13 = vector.broadcast %cst_10 : f32 to vector<32x64xf32>
    %14 = arith.cmpf ogt, %12, %13 : vector<32x64xf32>
    %cst_11 = arith.constant 0.000000e+00 : f32
    %15 = vector.broadcast %cst_11 : f32 to vector<32x64xf32>
    %16 = arith.minimumf %12, %15 : vector<32x64xf32>
    %17 = math.exp %16 : vector<32x64xf32>
    %cst_12 = arith.constant 1.000000e+00 : f32
    %18 = vector.broadcast %cst_12 : f32 to vector<32x64xf32>
    %19 = arith.subf %17, %18 : vector<32x64xf32>
    %20 = arith.select %14, %12, %19 : vector<32x64xi1>, vector<32x64xf32>
    %21 = arith.truncf %20 : vector<32x64xf32> to vector<32x64xbf16>
    %cst_13 = arith.constant dense<0.000000e+00> : vector<32x64xf32>
    %22 = tpu.matmul %1, %21, %cst_13 {dimension_numbers = #tpu.dot_dimension_numbers<[1], [0], [0], [1], [0, 0, 1, 1], [], []>} : vector<32x32xbf16>, vector<32x64xbf16>, vector<32x64xf32> -> vector<32x64xf32>
    %23 = arith.addf %22, %7 : vector<32x64xf32>
    %cst_14 = arith.constant 0.000000e+00 : f32
    %24 = vector.broadcast %cst_14 : f32 to vector<32x64xf32>
    %25 = arith.cmpf ogt, %23, %24 : vector<32x64xf32>
    %cst_15 = arith.constant 0.000000e+00 : f32
    %26 = vector.broadcast %cst_15 : f32 to vector<32x64xf32>
    %27 = arith.minimumf %23, %26 : vector<32x64xf32>
    %28 = math.exp %27 : vector<32x64xf32>
    %cst_16 = arith.constant 1.000000e+00 : f32
    %29 = vector.broadcast %cst_16 : f32 to vector<32x64xf32>
    %30 = arith.subf %28, %29 : vector<32x64xf32>
    %31 = arith.select %25, %23, %30 : vector<32x64xi1>, vector<32x64xf32>
    %c0_17 = arith.constant 0 : index
    %c0_18 = arith.constant 0 : index
    %c0_19 = arith.constant 0 : index
    %32 = vector.load %arg6[%c0_17, %c0_18, %c0_19] : memref<1x32x64xf32, #tpu.memory_space<vmem>>, vector<1x32x64xf32>
    %33 = vector.shape_cast %32 : vector<1x32x64xf32> to vector<32x64xf32>
    %34 = vector.shape_cast %31 : vector<32x64xf32> to vector<1x32x64xf32>
    tpu.vector_store %arg6[%c0_17, %c0_18, %c0_19], %34 {strides = array<i32>} : memref<1x32x64xf32, #tpu.memory_space<vmem>>, vector<1x32x64xf32>,
    return
  }
  func.func @transform_0(%arg0: i32) -> (i32, i32, i32) {
    %c0_i32 = arith.constant 0 : i32
    %c0_i32_0 = arith.constant 0 : i32
    %c0_i32_1 = arith.constant 0 : i32
    return %arg0, %c0_i32, %c0_i32_0 : i32, i32, i32
  }
  func.func @transform_1(%arg0: i32) -> (i32, i32) {
    %c0_i32 = arith.constant 0 : i32
    %c0_i32_0 = arith.constant 0 : i32
    %c0_i32_1 = arith.constant 0 : i32
    return %c0_i32, %c0_i32_0 : i32, i32
  }
  func.func @transform_2(%arg0: i32) -> (i32, i32) {
    %c0_i32 = arith.constant 0 : i32
    %c0_i32_0 = arith.constant 0 : i32
    %c0_i32_1 = arith.constant 0 : i32
    return %c0_i32, %c0_i32_0 : i32, i32
  }
  func.func @transform_3(%arg0: i32) -> (i32, i32) {
    %c0_i32 = arith.constant 0 : i32
    %c0_i32_0 = arith.constant 0 : i32
    %c0_i32_1 = arith.constant 0 : i32
    return %c0_i32, %c0_i32_0 : i32, i32
  }
  func.func @transform_4(%arg0: i32) -> (i32, i32) {
    %c0_i32 = arith.constant 0 : i32
    %c0_i32_0 = arith.constant 0 : i32
    %c0_i32_1 = arith.constant 0 : i32
    return %c0_i32, %c0_i32_0 : i32, i32
  }
  func.func @transform_5(%arg0: i32) -> (i32, i32, i32) {
    %c0_i32 = arith.constant 0 : i32
    %c0_i32_0 = arith.constant 0 : i32
    %c0_i32_1 = arith.constant 0 : i32
    return %arg0, %c0_i32, %c0_i32_0 : i32, i32, i32
  }
}

</mosaic_0001>

<llo_original>
// kernel: tpu_custom_call.1
$region0: #{tpu_custom_call.1}
  #allocation0 [shape = 'u32[]', space=smem, size = 0x4, offset = 0x4, fixed_abs, tag = 'smem constant byte address 0x4 - core index']
  #allocation1 [shape = 'u32[72,128]{1,0:T(1,128)}', space=vmem, size = 0x9000, scoped, tag = 'internal scratch']
  %s0 = inlined_call_operand.hbm [shape: f32[2,64,64], index: 0, kind: input, shape index: {}]
  %s1 = inlined_call_operand.vmem [shape: bf16[32,64], index: 1, kind: input, shape index: {}]
  %s2 = inlined_call_operand.vmem [shape: f32[32,1], index: 2, kind: input, shape index: {}]
  %s3 = inlined_call_operand.vmem [shape: bf16[32,32], index: 3, kind: input, shape index: {}]
  %s4 = inlined_call_operand.vmem [shape: f32[32,1], index: 4, kind: input, shape index: {}]
  %s5 = inlined_call_operand.hbm [shape: f32[2,32,64], index: 5, kind: output, shape index: {}]
  %s6 = sld [smem:[#allocation0]]
  $region57: #{tpu_custom_call.1} parent=0
    _
  %s8 = ssub.s32 1, %s6
  %s9 = scalar_select 0, %s8, %s6
  $region1: #{tpu_custom_call.1} parent=0
    #allocation2 [shape = 'u8[65536]{0}', space=vmem, size = 0x10000, scoped, tag = 'input window, operand 0']
    #allocation3 [shape = 's32[2]{0}', space=sflag, size = 0x8, scoped, tag = 'scoped memory for tpu_custom_call.1']
    #allocation4 [shape = 's32[2]{0}', space=sflag, size = 0x8, scoped, tag = 'scoped memory for tpu_custom_call.1']
    #allocation5 [shape = 'u8[32768]{0}', space=vmem, size = 0x8000, scoped, tag = 'output window, operand 0']
    %10 = vsyncpa [#allocation3], 0
    %s11 = scalar_lea.sflag [#allocation3], 1
    %12 = vsyncpa %s11, 0
    %13 = vsyncpa [#allocation4], 0
    %s14 = scalar_lea.sflag [#allocation4], 1
    %15 = vsyncpa %s14, 0
    loop: start=0, step=1, limit=4
    $region2: #{tpu_custom_call.1} parent=1 // loop_pre_header
      _
    $region3: #{tpu_custom_call.1} parent=1 // loop_header
      %s17 = sphi 0, %s21
      %p18 = scmp.ge.s32.totalorder %s17, 4
      %s27 = sphi 0, %s29
      %s30 = sphi 0, %s27
      %s31 = sphi 0, %s30
      %s47 = sphi 0, %s31
      %s51 = sphi 0, %s51
      %s53 = sphi 0, %s51
      %s54 = sphi 0, %s53
      %s68 = sphi 0, %s54
      %s72 = sphi 0, %s72
      %s74 = sphi 0, %s72
      %s75 = sphi 0, %s74
      %s89 = sphi 0, %s75
      %s93 = sphi 0, %s93
      %s95 = sphi 0, %s93
      %s96 = sphi 0, %s95
      %s110 = sphi 0, %s96
      %s114 = sphi 0, %s114
      %s116 = sphi 0, %s114
      %s117 = sphi 0, %s116
      %s131 = sphi 0, %s117
      %s137 = sphi 0, %s139
      %s140 = sphi 0, %s137
      %s141 = sphi 0, %s140
      %s157 = sphi 0, %s141
    $region4: #{tpu_custom_call.1} parent=1 // loop_header_branch
      %20 = sbr.rel (%p18) target = $region8
    $region5: #{tpu_custom_call.1} parent=1 // loop_body
      %s22 = ssub.s32 %s17, 1
      %s23 = ssub.s32 %s17, 2
      %s24 = sadd.s32 %s17, 1
      %s25 = ssub.s32 %s17, %s24
      %p26 = scmp.eq.s32.totalorder %s25, 0
      %s28 = sadd.s32 %s27, 1
      %s29 = scalar_select %p26, %s27, %s28
      %p32 = pneg %p26
      %p33 = scmp.eq.s32.totalorder %s17, 1
      %p34 = por %p32, %p33
      %p35 = scmp.ne.s32.totalorder %s27, %s30
      %p36 = scmp.eq.s32.totalorder %s17, 0
      %p37 = por %p35, %p36
      %p38 = scmp.ne.s32.totalorder %s27, %s30
      %p39 = scmp.eq.s32.totalorder %s22, 1
      %p40 = por %p38, %p39
      %p41 = scmp.ne.s32.totalorder %s30, %s31
      %p42 = scmp.eq.s32.totalorder %s22, 0
      %p43 = por %p41, %p42
      %p44 = scmp.ne.s32.totalorder %s30, %s31
      %p45 = scmp.eq.s32.totalorder %s23, 1
      %p46 = por %p44, %p45
      %p48 = scmp.ne.s32.totalorder %s31, %s47
      %p49 = scmp.eq.s32.totalorder %s23, 0
      %p50 = por %p48, %p49
      %s52 = sadd.s32 %s51, 1
      %p55 = scmp.eq.s32.totalorder %s17, 1
      %p56 = scmp.ne.s32.totalorder %s51, %s53
      %p57 = scmp.eq.s32.totalorder %s17, 0
      %p58 = por %p56, %p57
      %p59 = scmp.ne.s32.totalorder %s51, %s53
      %p60 = scmp.eq.s32.totalorder %s22, 1
      %p61 = por %p59, %p60
      %p62 = scmp.ne.s32.totalorder %s53, %s54
      %p63 = scmp.eq.s32.totalorder %s22, 0
      %p64 = por %p62, %p63
      %p65 = scmp.ne.s32.totalorder %s53, %s54
      %p66 = scmp.eq.s32.totalorder %s23, 1
      %p67 = por %p65, %p66
      %p69 = scmp.ne.s32.totalorder %s54, %s68
      %p70 = scmp.eq.s32.totalorder %s23, 0
      %p71 = por %p69, %p70
      %s73 = sadd.s32 %s72, 1
      %p76 = scmp.eq.s32.totalorder %s17, 1
      %p77 = scmp.ne.s32.totalorder %s72, %s74
      %p78 = scmp.eq.s32.totalorder %s17, 0
      %p79 = por %p77, %p78
      %p80 = scmp.ne.s32.totalorder %s72, %s74
      %p81 = scmp.eq.s32.totalorder %s22, 1
      %p82 = por %p80, %p81
      %p83 = scmp.ne.s32.totalorder %s74, %s75
      %p84 = scmp.eq.s32.totalorder %s22, 0
      %p85 = por %p83, %p84
      %p86 = scmp.ne.s32.totalorder %s74, %s75
      %p87 = scmp.eq.s32.totalorder %s23, 1
      %p88 = por %p86, %p87
      %p90 = scmp.ne.s32.totalorder %s75, %s89
      %p91 = scmp.eq.s32.totalorder %s23, 0
      %p92 = por %p90, %p91
      %s94 = sadd.s32 %s93, 1
      %p97 = scmp.eq.s32.totalorder %s17, 1
      %p98 = scmp.ne.s32.totalorder %s93, %s95
      %p99 = scmp.eq.s32.totalorder %s17, 0
      %p100 = por %p98, %p99
      %p101 = scmp.ne.s32.totalorder %s93, %s95
      %p102 = scmp.eq.s32.totalorder %s22, 1
      %p103 = por %p101, %p102
      %p104 = scmp.ne.s32.totalorder %s95, %s96
      %p105 = scmp.eq.s32.totalorder %s22, 0
      %p106 = por %p104, %p105
      %p107 = scmp.ne.s32.totalorder %s95, %s96
      %p108 = scmp.eq.s32.totalorder %s23, 1
      %p109 = por %p107, %p108
      %p111 = scmp.ne.s32.totalorder %s96, %s110
      %p112 = scmp.eq.s32.totalorder %s23, 0
      %p113 = por %p111, %p112
      %s115 = sadd.s32 %s114, 1
      %p118 = scmp.eq.s32.totalorder %s17, 1
      %p119 = scmp.ne.s32.totalorder %s114, %s116
      %p120 = scmp.eq.s32.totalorder %s17, 0
      %p121 = por %p119, %p120
      %p122 = scmp.ne.s32.totalorder %s114, %s116
      %p123 = scmp.eq.s32.totalorder %s22, 1
      %p124 = por %p122, %p123
      %p125 = scmp.ne.s32.totalorder %s116, %s117
      %p126 = scmp.eq.s32.totalorder %s22, 0
      %p127 = por %p125, %p126
      %p128 = scmp.ne.s32.totalorder %s116, %s117
      %p129 = scmp.eq.s32.totalorder %s23, 1
      %p130 = por %p128, %p129
      %p132 = scmp.ne.s32.totalorder %s117, %s131
      %p133 = scmp.eq.s32.totalorder %s23, 0
      %p134 = por %p132, %p133
      %s135 = ssub.s32 %s17, %s24
      %p136 = scmp.eq.s32.totalorder %s135, 0
      %s138 = sadd.s32 %s137, 1
      %s139 = scalar_select %p136, %s137, %s138
      %p142 = pneg %p136
      %p143 = scmp.eq.s32.totalorder %s17, 1
      %p144 = por %p142, %p143
      %p145 = scmp.ne.s32.totalorder %s137, %s140
      %p146 = scmp.eq.s32.totalorder %s17, 0
      %p147 = por %p145, %p146
      %p148 = scmp.ne.s32.totalorder %s137, %s140
      %p149 = scmp.eq.s32.totalorder %s22, 1
      %p150 = por %p148, %p149
      %p151 = scmp.ne.s32.totalorder %s140, %s141
      %p152 = scmp.eq.s32.totalorder %s22, 0
      %p153 = por %p151, %p152
      %p154 = scmp.ne.s32.totalorder %s140, %s141
      %p155 = scmp.eq.s32.totalorder %s23, 1
      %p156 = por %p154, %p155
      %p158 = scmp.ne.s32.totalorder %s141, %s157
      %p159 = scmp.eq.s32.totalorder %s23, 0
      %p160 = por %p158, %p159
      %p161 = scmp.le.s32.totalorder 1, %s17
      %p162 = scmp.lt.s32.totalorder %s17, 3
      %p163 = pnand %p161, %p162
      %p164 = pneg %p163
      // Predicated region
      $region9: #{tpu_custom_call.1} parent=5 // pred_check
        _
      $region10: #{tpu_custom_call.1} parent=5 // pred_check_branch
        %166 = sbr.rel (%p163) target = $region12
      $region11: #{tpu_custom_call.1} parent=5 // pred_region
        %s167 = ssub.s32 %s17, 1
        // Predicated region
        $region13: #{tpu_custom_call.1} parent=11 // pred_check
          %p168 = pneg %p64
        $region14: #{tpu_custom_call.1} parent=11 // pred_check_branch
          %170 = sbr.rel (%p168) target = $region16
        $region15: #{tpu_custom_call.1} parent=11 // pred_region
          _
        $region16: #{tpu_custom_call.1} parent=11 // pred_fallthru
          _
        // Predicated region
        $region17: #{tpu_custom_call.1} parent=11 // pred_check
          %p171 = pneg %p85
        $region18: #{tpu_custom_call.1} parent=11 // pred_check_branch
          %173 = sbr.rel (%p171) target = $region20
        $region19: #{tpu_custom_call.1} parent=11 // pred_region
          _
        $region20: #{tpu_custom_call.1} parent=11 // pred_fallthru
          _
        // Predicated region
        $region21: #{tpu_custom_call.1} parent=11 // pred_check
          %p174 = pneg %p106
        $region22: #{tpu_custom_call.1} parent=11 // pred_check_branch
          %176 = sbr.rel (%p174) target = $region24
        $region23: #{tpu_custom_call.1} parent=11 // pred_region
          _
        $region24: #{tpu_custom_call.1} parent=11 // pred_fallthru
          _
        // Predicated region
        $region25: #{tpu_custom_call.1} parent=11 // pred_check
          %p177 = pneg %p127
        $region26: #{tpu_custom_call.1} parent=11 // pred_check_branch
          %179 = sbr.rel (%p177) target = $region28
        $region27: #{tpu_custom_call.1} parent=11 // pred_region
          _
        $region28: #{tpu_custom_call.1} parent=11 // pred_fallthru
          _
      $region12: #{tpu_custom_call.1} parent=5 // pred_fallthru
        _
      %p180 = scmp.lt.s32.totalorder %s17, 2
      // Predicated region
      $region29: #{tpu_custom_call.1} parent=5 // pred_check
        %p181 = pneg %p180
      $region30: #{tpu_custom_call.1} parent=5 // pred_check_branch
        %183 = sbr.rel (%p181) target = $region32
      $region31: #{tpu_custom_call.1} parent=5 // pred_region
        // Predicated region
        $region33: #{tpu_custom_call.1} parent=31 // pred_check
          %p184 = pneg %p37
        $region34: #{tpu_custom_call.1} parent=31 // pred_check_branch
          %186 = sbr.rel (%p184) target = $region36
        $region35: #{tpu_custom_call.1} parent=31 // pred_region
          %s187 = sand.u32 %s27, 1
          %s188 = scalar_lea.sflag [#allocation3], %s187
          %s189 = sand.u32 %s27, 1
          %s190 = smul.addr %s189, 64
          %s191 = scalar_lea.vmem [#allocation2], %s190
          %193 = vsyncadd %s188, 0
          %s194 = smul.addr %s17, 8
          %s195 = smul.addr %s194, 8
          %s196 = scalar_lea.hbm %s0, %s195
          %s197 = sshll.u32 %s196, 4
          %s198 = int_to_ptr.hbm [resolvable:$true] %s197
          %s199 = sshll.u32 %s191, 4
          %s200 = int_to_ptr.vmem [resolvable:$true] %s199
          %205 = dma.hbm_to_vmem [thread:$0]  %s198, 1024, %s200, %s188, 128, 128, 8
        $region36: #{tpu_custom_call.1} parent=31 // pred_fallthru
          _
      $region32: #{tpu_custom_call.1} parent=5 // pred_fallthru
        _
      %p206 = scmp.le.s32.totalorder 1, %s17
      %p207 = scmp.lt.s32.totalorder %s17, 3
      %p208 = pnand %p206, %p207
      %p209 = pneg %p208
      // Predicated region
      $region37: #{tpu_custom_call.1} parent=5 // pred_check
        _
      $region38: #{tpu_custom_call.1} parent=5 // pred_check_branch
        %211 = sbr.rel (%p208) target = $region40
      $region39: #{tpu_custom_call.1} parent=5 // pred_region
        %s212 = ssub.s32 %s17, 1
        %s213 = sand.u32 %s30, 1
        %s214 = scalar_lea.sflag [#allocation3], %s213
        %s215 = sand.u32 %s30, 1
        %s216 = smul.addr %s215, 64
        %s217 = scalar_lea.vmem [#allocation2], %s216
        // Predicated region
        $region41: #{tpu_custom_call.1} parent=39 // pred_check
          %p218 = pneg %p43
        $region42: #{tpu_custom_call.1} parent=39 // pred_check_branch
          %220 = sbr.rel (%p218) target = $region44
        $region43: #{tpu_custom_call.1} parent=39 // pred_region
          %222 = dma.done %s214, 1024
        $region44: #{tpu_custom_call.1} parent=39 // pred_fallthru
          _
        %s223 = sand.u32 %s30, 1
        %s224 = scalar_lea.sflag [#allocation3], %s223
        %s225 = sand.u32 %s30, 1
        %s226 = smul.addr %s225, 64
        %s227 = scalar_lea.vmem [#allocation2], %s226
        %p228 = pneg %p43
        %p229 = pneg %p40
        %p230 = pneg %p64
        %p231 = pneg %p61
        %p232 = pneg %p85
        %p233 = pneg %p82
        %p234 = pneg %p106
        %p235 = pneg %p103
        %p236 = pneg %p127
        %p237 = pneg %p124
        %p238 = pneg %p153
        %p239 = pneg %p150
        %s240 = sand.u32 %s140, 1
        %s241 = scalar_lea.sflag [#allocation4], %s240
        %s242 = sand.u32 %s140, 1
        %s243 = smul.addr %s242, 32
        %s244 = scalar_lea.vmem [#allocation5], %s243
        %v246 = vld [vmem:[%s1] sm:$0xf]
        %v247 = vld [vmem:[%s1 + $0x4] sm:$0xf]
        %v248 = vld [vmem:[%s1 + $0x8] sm:$0xf]
        %v249 = vld [vmem:[%s1 + $0xc] sm:$0xf]
        %v250 = vld [vmem:[%s3] sm:$0xf]
        %v251 = vld [vmem:[%s3 + $0x4] sm:$0xf]
        %v252 = vld [vmem:[%s3 + $0x8] sm:$0xf]
        %v253 = vld [vmem:[%s3 + $0xc] sm:$0xf]
        %v254 = vld [vmem:[%s2] sm:$0xff]
        %v255 = vld [vmem:[%s2 + $0x8] sm:$0xff]
        %v256 = vld [vmem:[%s2 + $0x10] sm:$0xff]
        %v257 = vld [vmem:[%s2 + $0x18] sm:$0xff]
        %259 = vset.pattern.permute.xlu0 0
        %260 = vperm.xlu0 %259, %v254
        %v261 = vpop.permute.xlu0 %260
        %264 = vset.pattern.permute.xlu0 0
        %265 = vperm.xlu0 %264, %v255
        %v266 = vpop.permute.xlu0 %265
        %269 = vset.pattern.permute.xlu0 0
        %270 = vperm.xlu0 %269, %v256
        %v271 = vpop.permute.xlu0 %270
        %274 = vset.pattern.permute.xlu0 0
        %275 = vperm.xlu0 %274, %v257
        %v276 = vpop.permute.xlu0 %275
        %v278 = vld [vmem:[%s4] sm:$0xff]
        %v279 = vld [vmem:[%s4 + $0x8] sm:$0xff]
        %v280 = vld [vmem:[%s4 + $0x10] sm:$0xff]
        %v281 = vld [vmem:[%s4 + $0x18] sm:$0xff]
        %283 = vset.pattern.permute.xlu0 0
        %284 = vperm.xlu0 %283, %v278
        %v285 = vpop.permute.xlu0 %284
        %288 = vset.pattern.permute.xlu0 0
        %289 = vperm.xlu0 %288, %v279
        %v290 = vpop.permute.xlu0 %289
        %293 = vset.pattern.permute.xlu0 0
        %294 = vperm.xlu0 %293, %v280
        %v295 = vpop.permute.xlu0 %294
        %298 = vset.pattern.permute.xlu0 0
        %299 = vperm.xlu0 %298, %v281
        %v300 = vpop.permute.xlu0 %299
        %v302 = vld [vmem:[%s217] sm:$0xff]
        %v303 = vld [vmem:[%s217 + $0x8] sm:$0xff]
        %v304 = vld [vmem:[%s217 + $0x10] sm:$0xff]
        %v305 = vld [vmem:[%s217 + $0x18] sm:$0xff]
        %v306 = vld [vmem:[%s217 + $0x20] sm:$0xff]
        %v307 = vld [vmem:[%s217 + $0x28] sm:$0xff]
        %v308 = vld [vmem:[%s217 + $0x30] sm:$0xff]
        %v309 = vld [vmem:[%s217 + $0x38] sm:$0xff]
        %v310 = vpack.c.bf16 %v303, %v302
        %v311 = vpack.c.bf16 %v305, %v304
        %v312 = vpack.c.bf16 %v307, %v306
        %v313 = vpack.c.bf16 %v309, %v308
        %v318 = vunpack.c.l.b16 %v246
        %v319 = vunpack.c.l.b16 %v247
        %v320 = vunpack.c.l.b16 %v248
        %v321 = vunpack.c.l.b16 %v249
        %v322 = vpack.c.b16 %v319, %v318
        %v323 = vpack.c.b16 %v321, %v320
        %vm324 = vcmask 523264
        %v326 = vsel %vm324, %v322, 0
        %v329 = vsel %vm324, %v323, 0
        %331 = vmatpush.bf16.msra.mxu0 0
        %332 = vmatpush.bf16.msra.mxu0 0
        %333 = vmatpush.bf16.msra.mxu0 0
        %334 = vmatpush.bf16.msra.mxu0 0
        %335 = vmatpush.bf16.msra.mxu0 %v313
        %336 = vmatpush.bf16.msra.mxu0 %v312
        %337 = vmatpush.bf16.msra.mxu0 %v311
        %338 = vmatpush.bf16.msra.mxu0 %v310
        %339 = vmatmul.bf16.gmra.mxu0 %v326
        %v340 = vpop.f32.mrf.mxu0
        %v341 = vadd.f32 %v261, %v340
        %v342 = vpop.f32.mrf.mxu0
        %v343 = vadd.f32 %v266, %v342
        %344 = vmatmul.bf16.gmra.mxu0 %v329
        %v345 = vpop.f32.mrf.mxu0
        %v346 = vadd.f32 %v271, %v345
        %v347 = vpop.f32.mrf.mxu0
        %v348 = vadd.f32 %v276, %v347
        %349 = vdwg.mxu0
        %vm350 = vcmp.gt.f32.partialorder %v341, 0.0
        %vm351 = vcmp.gt.f32.partialorder %v343, 0.0
        %vm352 = vcmp.gt.f32.partialorder %v346, 0.0
        %vm353 = vcmp.gt.f32.partialorder %v348, 0.0
        %v354 = vmin.f32 %v341, 0.0
        %v355 = vmin.f32 %v343, 0.0
        %v356 = vmin.f32 %v346, 0.0
        %v357 = vmin.f32 %v348, 0.0
        %v358 = vmul.f32 %v354, 1.442695
        %v359 = vpow.pop %v358
        %v360 = vmul.f32 %v355, 1.442695
        %v361 = vpow.pop %v360
        %v362 = vmul.f32 %v356, 1.442695
        %v363 = vpow.pop %v362
        %v364 = vmul.f32 %v357, 1.442695
        %v365 = vpow.pop %v364
        %v366 = vsub.f32 %v359, 1.0
        %v367 = vsub.f32 %v361, 1.0
        %v368 = vsub.f32 %v363, 1.0
        %v369 = vsub.f32 %v365, 1.0
        %v370 = vsel %vm350, %v341, %v366
        %v371 = vsel %vm351, %v343, %v367
        %v372 = vsel %vm352, %v346, %v368
        %v373 = vsel %vm353, %v348, %v369
        %v374 = vpack.c.bf16 %v371, %v370
        %v375 = vpack.c.bf16 %v373, %v372
        %v380 = vunpack.c.l.b16 %v250
        %v381 = vunpack.c.l.b16 %v251
        %v382 = vunpack.c.l.b16 %v252
        %v383 = vunpack.c.l.b16 %v253
        %v384 = vpack.c.b16 %v381, %v380
        %v385 = vpack.c.b16 %v383, %v382
        %vm386 = vcmask 261120
        %v388 = vsel %vm386, %v384, 0
        %v391 = vsel %vm386, %v385, 0
        %393 = vmatpush.bf16.msra.mxu0 0
        %394 = vmatpush.bf16.msra.mxu0 0
        %395 = vmatpush.bf16.msra.mxu0 0
        %396 = vmatpush.bf16.msra.mxu0 0
        %397 = vmatpush.bf16.msra.mxu0 0
        %398 = vmatpush.bf16.msra.mxu0 0
        %399 = vmatpush.bf16.msra.mxu0 %v375
        %400 = vmatpush.bf16.msra.mxu0 %v374
        %401 = vmatmul.bf16.gmra.mxu0 %v388
        %v402 = vpop.f32.mrf.mxu0
        %v403 = vadd.f32 %v285, %v402
        %v404 = vpop.f32.mrf.mxu0
        %v405 = vadd.f32 %v290, %v404
        %406 = vmatmul.bf16.gmra.mxu0 %v391
        %v407 = vpop.f32.mrf.mxu0
        %v408 = vadd.f32 %v295, %v407
        %v409 = vpop.f32.mrf.mxu0
        %v410 = vadd.f32 %v300, %v409
        %411 = vdwg.mxu0
        %vm412 = vcmp.gt.f32.partialorder %v403, 0.0
        %vm413 = vcmp.gt.f32.partialorder %v405, 0.0
        %vm414 = vcmp.gt.f32.partialorder %v408, 0.0
        %vm415 = vcmp.gt.f32.partialorder %v410, 0.0
        %v416 = vmin.f32 %v403, 0.0
        %v417 = vmin.f32 %v405, 0.0
        %v418 = vmin.f32 %v408, 0.0
        %v419 = vmin.f32 %v410, 0.0
        %v420 = vmul.f32 %v416, 1.442695
        %v421 = vpow.pop %v420
        %v422 = vmul.f32 %v417, 1.442695
        %v423 = vpow.pop %v422
        %v424 = vmul.f32 %v418, 1.442695
        %v425 = vpow.pop %v424
        %v426 = vmul.f32 %v419, 1.442695
        %v427 = vpow.pop %v426
        %v428 = vsub.f32 %v421, 1.0
        %v429 = vsub.f32 %v423, 1.0
        %v430 = vsub.f32 %v425, 1.0
        %v431 = vsub.f32 %v427, 1.0
        %v432 = vsel %vm412, %v403, %v428
        %v433 = vsel %vm413, %v405, %v429
        %v434 = vsel %vm414, %v408, %v430
        %v435 = vsel %vm415, %v410, %v431
        %436 = vst.msk [vmem:[%s244] sm:$0xff] %vm324, %v432
        %437 = vst.msk [vmem:[%s244 + $0x8] sm:$0xff] %vm324, %v433
        %438 = vst.msk [vmem:[%s244 + $0x10] sm:$0xff] %vm324, %v434
        %439 = vst.msk [vmem:[%s244 + $0x18] sm:$0xff] %vm324, %v435
        %s440 = sand.u32 %s140, 1
        %s441 = scalar_lea.sflag [#allocation4], %s440
        %s442 = sand.u32 %s140, 1
        %s443 = smul.addr %s442, 32
        %s444 = scalar_lea.vmem [#allocation5], %s443
        // Predicated region
        $region45: #{tpu_custom_call.1} parent=39 // pred_check
          %p445 = pneg %p150
        $region46: #{tpu_custom_call.1} parent=39 // pred_check_branch
          %447 = sbr.rel (%p445) target = $region48
        $region47: #{tpu_custom_call.1} parent=39 // pred_region
          %449 = vsyncadd %s441, 0
          %s450 = smul.addr %s22, 4
          %s451 = smul.addr %s450, 8
          %s452 = scalar_lea.hbm %s5, %s451
          %s453 = sshll.u32 %s444, 4
          %s454 = int_to_ptr.vmem [resolvable:$true] %s453
          %s455 = sshll.u32 %s452, 4
          %s456 = int_to_ptr.hbm [resolvable:$true] %s455
          %461 = dma.vmem_to_hbm [thread:$0]  %s454, 512, %s456, %s441, 128, 128, 8
        $region48: #{tpu_custom_call.1} parent=39 // pred_fallthru
          _
      $region40: #{tpu_custom_call.1} parent=5 // pred_fallthru
        _
      %p462 = scmp.le.s32.totalorder 2, %s17
      // Predicated region
      $region49: #{tpu_custom_call.1} parent=5 // pred_check
        %p463 = pneg %p462
      $region50: #{tpu_custom_call.1} parent=5 // pred_check_branch
        %465 = sbr.rel (%p463) target = $region52
      $region51: #{tpu_custom_call.1} parent=5 // pred_region
        %s466 = ssub.s32 %s17, 2
        // Predicated region
        $region53: #{tpu_custom_call.1} parent=51 // pred_check
          %p467 = pneg %p156
        $region54: #{tpu_custom_call.1} parent=51 // pred_check_branch
          %469 = sbr.rel (%p467) target = $region56
        $region55: #{tpu_custom_call.1} parent=51 // pred_region
          %s470 = sand.u32 %s141, 1
          %s471 = scalar_lea.sflag [#allocation4], %s470
          %s472 = sand.u32 %s141, 1
          %s473 = smul.addr %s472, 32
          %s474 = scalar_lea.vmem [#allocation5], %s473
          %476 = dma.done %s471, 512
        $region56: #{tpu_custom_call.1} parent=51 // pred_fallthru
          _
      $region52: #{tpu_custom_call.1} parent=5 // pred_fallthru
        _
    $region6: #{tpu_custom_call.1} parent=1 // loop_footer
      %s21 = sadd.s32 1, %s17
    $region7: #{tpu_custom_call.1} parent=1 // loop_footer_branch
      %16 = sbr.rel target = $region3
    $region8: #{tpu_custom_call.1} parent=1 // loop_exit
      _
    %477 = vsyncpa [#allocation3], 1
    %s478 = scalar_lea.sflag [#allocation3], 1
    %479 = vsyncpa %s478, 1
    %480 = vsyncpa [#allocation4], 1
    %s481 = scalar_lea.sflag [#allocation4], 1
    %482 = vsyncpa %s481, 1

</llo_original>
